<compile_context>
chip_gen: v6e
topology: v6e:2x2x1
jax: 0.10.0
libtpu: 0.0.40
codegen_flags: <defaults>
</compile_context>

<pallas_src>
import math

import jax
import jax.numpy as jnp
from jax.experimental import pallas as pl
from jax.experimental.pallas import tpu as pltpu

LANE = 128              # TPU lane width
MAX_TILE_GROUPS = 512   # max group-rows per grid step
TILE_VMEM_BUDGET = 8 * 1024 * 1024   # bytes for the double-buffered x/out tiles


def _round_up(n, m):
    return (n + m - 1) // m * m


def choose_group(xDim, S):
    """Rows packed per group so that group-row width is a multiple of 128."""
    g = LANE // math.gcd(LANE, xDim)
    if g > 1 and (S % g == 0) and (g * xDim <= 4 * LANE):
        return g
    return 1


def _block_diag(w, g):
    """g-way block-diagonal replication of a 2-D matrix."""
    n_in, n_out = w.shape
    out = jnp.zeros((g * n_in, g * n_out), w.dtype)
    for i in range(g):
        out = out.at[i * n_in:(i + 1) * n_in, i * n_out:(i + 1) * n_out].set(w)
    return out


def _residual_kernel(x_ref, bn_ref, w1_ref, b1_ref, w2_ref, b2_ref, o_ref):
    # x: (TILE, L) packed rows.  bn: (TILE, 4) = [s1, t1, s2, t2] per row-group.
    x = x_ref[...]
    bn = bn_ref[...]
    s1 = bn[:, 0:1]
    t1 = bn[:, 1:2]
    s2 = bn[:, 2:3]
    t2 = bn[:, 3:4]

    # bn1 (folded affine, per-group scalar) + ReLU            (VPU, fp32)
    h = jnp.maximum(x * s1 + t1, 0.0)
    # fc1 + clamp(min=0)                                      (MXU, fp32 acc)
    h = jnp.dot(h, w1_ref[...], preferred_element_type=jnp.float32) + b1_ref[...]
    h = jnp.maximum(h, 0.0)
    # bn2 (folded affine) + ReLU
    h = jnp.maximum(h * s2 + t2, 0.0)
    # fc2
    y = jnp.dot(h, w2_ref[...], preferred_element_type=jnp.float32) + b2_ref[...]
    # residual add
    o_ref[...] = (y + x).astype(o_ref.dtype)


def prepare_params(w1, b1, w2, b2, g1, be1, m1, v1, g2, be2, m2, v2,
                   eps=1e-5, group=1):
    """One-time parameter prep (hoisted out of the per-call path).

    Torch layout in: w1 (H, xDim), w2 (xDim, H), biases 1-D, BN params per channel.
    Out: pre-transposed (and block-diag packed or lane-padded) weights/biases
    plus folded BN scale/shift.
    """
    H, xDim = w1.shape
    assert w2.shape == (xDim, H)
    # The module applies BatchNorm2d(H) over the channel dim (size C == xDim),
    # so it is only well-formed when H == xDim.
    assert H == xDim, "Residual5_0 is only well-formed when H == xDim"

    w1_t = jnp.asarray(w1, jnp.float32).T            # (xDim, H)
    w2_t = jnp.asarray(w2, jnp.float32).T            # (H, xDim)
    b1_f = jnp.asarray(b1, jnp.float32)
    b2_f = jnp.asarray(b2, jnp.float32)

    g = int(group)
    if g > 1:
        # Packed path: group-rows of width g*xDim (multiple of 128), block-diag weights.
        w1_p = _block_diag(w1_t, g)                  # (g*xDim, g*H)
        w2_p = _block_diag(w2_t, g)                  # (g*H, g*xDim)
        b1_p = jnp.tile(b1_f, g)[None, :]            # (1, g*H)
        b2_p = jnp.tile(b2_f, g)[None, :]            # (1, g*xDim)
    else:
        # Fallback path: lane-pad the feature dim with zeros.
        Dp = _round_up(xDim, LANE)
        w1_p = jnp.zeros((Dp, H), jnp.float32).at[:xDim, :].set(w1_t)
        w2_p = jnp.zeros((H, Dp), jnp.float32).at[:, :xDim].set(w2_t)
        b1_p = b1_f[None, :]
        b2_p = jnp.zeros((1, Dp), jnp.float32).at[0, :xDim].set(b2_f)

    s1 = jnp.asarray(g1, jnp.float32) / jnp.sqrt(jnp.asarray(v1, jnp.float32) + eps)
    t1 = jnp.asarray(be1, jnp.float32) - jnp.asarray(m1, jnp.float32) * s1
    s2 = jnp.asarray(g2, jnp.float32) / jnp.sqrt(jnp.asarray(v2, jnp.float32) + eps)
    t2 = jnp.asarray(be2, jnp.float32) - jnp.asarray(m2, jnp.float32) * s2
    return w1_p, b1_p, w2_p, b2_p, s1, t1, s2, t2


@jax.jit
def residual5_forward(x, w1_p, b1_p, w2_p, b2_p, s1, t1, s2, t2):
    """x: (B, C, S, xDim) with C == xDim == H (module constraint)."""
    B, C, S, xDim = x.shape
    assert C == xDim, "BatchNorm2d(xDim) requires channel dim == xDim"

    g = choose_group(xDim, S)
    L = int(w1_p.shape[0])       # packed / padded input width
    Lh = int(w1_p.shape[1])      # packed hidden width
    assert L == (g * xDim if g > 1 else _round_up(xDim, LANE)), \
        "prepared params do not match this input shape (group mismatch)"

    n_rows = B * C * S
    n_groups = n_rows // g

    x_rows = x.reshape(n_rows, xDim).astype(jnp.float32)
    if g > 1:
        x_in = x_rows.reshape(n_groups, g * xDim)        # free reshape, lane-dense
    elif L != xDim:
        x_in = jnp.pad(x_rows, ((0, 0), (0, L - xDim)))  # lane-pad fallback
    else:
        x_in = x_rows

    # Per-group BN scale/shift (rows ordered (b, c, s); each group shares channel c).
    def per_group(v):
        return jnp.broadcast_to(v[None, :, None], (B, C, S // g)).reshape(n_groups)

    bn = jnp.stack([per_group(s1), per_group(t1), per_group(s2), per_group(t2)],
                   axis=1)                                # (n_groups, 4) fp32

    # Tile size: as large as the VMEM budget allows, multiple of 8 (fp32 sublane).
    tile = TILE_VMEM_BUDGET // (4 * L * 4)                # 4 fp32 buffers of (tile, L)
    tile = max(8, min(MAX_TILE_GROUPS, tile)) // 8 * 8
    if n_groups <= tile:
        tile = n_groups                                   # full-extent block (allowed)
    n_tiles = pl.cdiv(n_groups, tile)

    out = pl.pallas_call(
        _residual_kernel,
        out_shape=jax.ShapeDtypeStruct((n_groups, L), jnp.float32),
        grid_spec=pltpu.PrefetchScalarGridSpec(
            num_scalar_prefetch=0,
            grid=(n_tiles,),
            in_specs=[
                pl.BlockSpec((tile, L), lambda i: (i, 0)),    # packed x rows
                pl.BlockSpec((tile, 4), lambda i: (i, 0)),    # BN [s1,t1,s2,t2]
                pl.BlockSpec((L, Lh), lambda i: (0, 0)),      # W1 (VMEM-resident)
                pl.BlockSpec((1, Lh), lambda i: (0, 0)),      # b1 (resident)
                pl.BlockSpec((Lh, L), lambda i: (0, 0)),      # W2 (resident)
                pl.BlockSpec((1, L), lambda i: (0, 0)),       # b2 (resident)
            ],
            out_specs=pl.BlockSpec((tile, L), lambda i: (i, 0)),
        ),
        compiler_params=pltpu.CompilerParams(
            dimension_semantics=("parallel",)),
    )(x_in, bn, w1_p, b1_p, w2_p, b2_p)

    if g > 1:
        y = out.reshape(n_rows, xDim)
    else:
        y = out[:, :xDim]
    return y.reshape(B, C, S, xDim).astype(x.dtype)


if __name__ == "__main__":
    # Small shapes consistent with the module's forward:
    # x is (B, C, S, xDim) with C == xDim, and the module forces H == xDim.
    B, S = 2, 8
    xDim = 32
    H = 32
    C = xDim
    eps = 1e-5

    key = jax.random.PRNGKey(0)
    ks = jax.random.split(key, 13)

    x = jax.random.normal(ks[0], (B, C, S, xDim), jnp.float32)

    # nn.Linear-style init (torch layout: (out_features, in_features)).
    lim1 = 1.0 / jnp.sqrt(jnp.float32(xDim))
    w1 = jax.random.uniform(ks[1], (H, xDim), jnp.float32, -lim1, lim1)
    b1 = jax.random.uniform(ks[2], (H,), jnp.float32, -lim1, lim1)
    lim2 = 1.0 / jnp.sqrt(jnp.float32(H))
    w2 = jax.random.uniform(ks[3], (xDim, H), jnp.float32, -lim2, lim2)
    b2 = jax.random.uniform(ks[4], (xDim,), jnp.float32, -lim2, lim2)

    # BatchNorm2d parameters + running stats (inference mode).
    g1 = 1.0 + 0.1 * jax.random.normal(ks[5], (xDim,), jnp.float32)
    be1 = 0.1 * jax.random.normal(ks[6], (xDim,), jnp.float32)
    m1 = 0.1 * jax.random.normal(ks[7], (xDim,), jnp.float32)
    v1 = jax.random.uniform(ks[8], (xDim,), jnp.float32, 0.5, 1.5)
    g2 = 1.0 + 0.1 * jax.random.normal(ks[9], (H,), jnp.float32)
    be2 = 0.1 * jax.random.normal(ks[10], (H,), jnp.float32)
    m2 = 0.1 * jax.random.normal(ks[11], (H,), jnp.float32)
    v2 = jax.random.uniform(ks[12], (H,), jnp.float32, 0.5, 1.5)

    # One-time param prep (transpose / block-diag pack / BN fold hoisted out of
    # the hot path).
    group = choose_group(xDim, S)
    params = prepare_params(w1, b1, w2, b2, g1, be1, m1, v1, g2, be2, m2, v2,
                            eps=eps, group=group)

    y = residual5_forward(x, *params)
    y = jax.block_until_ready(y)

    # Pure-JAX reference of the module's forward (eval-mode BN).
    s1 = g1 / jnp.sqrt(v1 + eps)
    t1 = be1 - m1 * s1
    s2 = g2 / jnp.sqrt(v2 + eps)
    t2 = be2 - m2 * s2
    out = jnp.maximum(x * s1[None, :, None, None] + t1[None, :, None, None], 0.0)
    out = jnp.maximum(jnp.einsum("bcsw,hw->bcsh", out, w1) + b1, 0.0)
    out = jnp.maximum(out * s2[None, :, None, None] + t2[None, :, None, None], 0.0)
    out = jnp.einsum("bcsh,wh->bcsw", out, w2) + b2
    ref = out + x

    assert y.shape == x.shape
    assert jnp.allclose(y, ref, atol=1e-4, rtol=1e-4)

    print("KERNEL_OK")
</pallas_src>

<mosaic_0001>
module attributes {stable_mosaic.version = 11 : i64} {
  func.func @_residual_kernel(%arg0: i32, %arg1: memref<128x128xf32, #tpu.memory_space<vmem>>, %arg2: memref<128x4xf32, #tpu.memory_space<vmem>>, %arg3: memref<128x128xf32, #tpu.memory_space<vmem>>, %arg4: memref<1x128xf32, #tpu.memory_space<vmem>>, %arg5: memref<128x128xf32, #tpu.memory_space<vmem>>, %arg6: memref<1x128xf32, #tpu.memory_space<vmem>>, %arg7: memref<128x128xf32, #tpu.memory_space<vmem>>) attributes {dimension_semantics = [#tpu.dimension_semantics<parallel>], iteration_bounds = array<i64: 1>, scalar_prefetch = 0 : i64, scratch_operands = 0 : i64, tpu.core_type = #tpu.core_type<tc>, window_params = [{transform_indices = @transform_0, window_bounds = array<i64: 128, 128>}, {transform_indices = @transform_1, window_bounds = array<i64: 128, 4>}, {pipeline_mode = #tpu.pipeline_mode<synchronous>, transform_indices = @transform_2, window_bounds = array<i64: 128, 128>}, {pipeline_mode = #tpu.pipeline_mode<synchronous>, transform_indices = @transform_3, window_bounds = array<i64: 1, 128>}, {pipeline_mode = #tpu.pipeline_mode<synchronous>, transform_indices = @transform_4, window_bounds = array<i64: 128, 128>}, {pipeline_mode = #tpu.pipeline_mode<synchronous>, transform_indices = @transform_5, window_bounds = array<i64: 1, 128>}, {transform_indices = @transform_6, window_bounds = array<i64: 128, 128>}]} {
    %c0 = arith.constant 0 : index
    %c0_0 = arith.constant 0 : index
    %0 = vector.load %arg1[%c0, %c0_0] : memref<128x128xf32, #tpu.memory_space<vmem>>, vector<128x128xf32>
    %c0_1 = arith.constant 0 : index
    %c0_2 = arith.constant 0 : index
    %1 = vector.load %arg2[%c0_1, %c0_2] : memref<128x4xf32, #tpu.memory_space<vmem>>, vector<128x4xf32>
    %2 = vector.extract_strided_slice %1 {offsets = [0, 0], sizes = [128, 1], strides = [1, 1]} : vector<128x4xf32> to vector<128x1xf32>
    %3 = vector.extract_strided_slice %1 {offsets = [0, 1], sizes = [128, 1], strides = [1, 1]} : vector<128x4xf32> to vector<128x1xf32>
    %4 = vector.extract_strided_slice %1 {offsets = [0, 2], sizes = [128, 1], strides = [1, 1]} : vector<128x4xf32> to vector<128x1xf32>
    %5 = vector.extract_strided_slice %1 {offsets = [0, 3], sizes = [128, 1], strides = [1, 1]} : vector<128x4xf32> to vector<128x1xf32>
    %6 = vector.broadcast %2 : vector<128x1xf32> to vector<128x128xf32>
    %7 = arith.mulf %0, %6 : vector<128x128xf32>
    %8 = vector.broadcast %3 : vector<128x1xf32> to vector<128x128xf32>
    %9 = arith.addf %7, %8 : vector<128x128xf32>
    %cst = arith.constant 0.000000e+00 : f32
    %10 = vector.broadcast %cst : f32 to vector<128x128xf32>
    %11 = arith.maximumf %9, %10 : vector<128x128xf32>
    %c0_3 = arith.constant 0 : index
    %c0_4 = arith.constant 0 : index
    %12 = vector.load %arg3[%c0_3, %c0_4] : memref<128x128xf32, #tpu.memory_space<vmem>>, vector<128x128xf32>
    %cst_5 = arith.constant dense<0.000000e+00> : vector<128x128xf32>
    %13 = tpu.matmul %11, %12, %cst_5 {dimension_numbers = #tpu.dot_dimension_numbers<[1], [0], [0], [1], [0, 0, 1, 1], [], []>} : vector<128x128xf32>, vector<128x128xf32>, vector<128x128xf32> -> vector<128x128xf32>
    %c0_6 = arith.constant 0 : index
    %c0_7 = arith.constant 0 : index
    %14 = vector.load %arg4[%c0_6, %c0_7] : memref<1x128xf32, #tpu.memory_space<vmem>>, vector<1x128xf32>
    %15 = vector.broadcast %14 : vector<1x128xf32> to vector<128x128xf32>
    %16 = arith.addf %13, %15 : vector<128x128xf32>
    %cst_8 = arith.constant 0.000000e+00 : f32
    %17 = vector.broadcast %cst_8 : f32 to vector<128x128xf32>
    %18 = arith.maximumf %16, %17 : vector<128x128xf32>
    %19 = vector.broadcast %4 : vector<128x1xf32> to vector<128x128xf32>
    %20 = arith.mulf %18, %19 : vector<128x128xf32>
    %21 = vector.broadcast %5 : vector<128x1xf32> to vector<128x128xf32>
    %22 = arith.addf %20, %21 : vector<128x128xf32>
    %cst_9 = arith.constant 0.000000e+00 : f32
    %23 = vector.broadcast %cst_9 : f32 to vector<128x128xf32>
    %24 = arith.maximumf %22, %23 : vector<128x128xf32>
    %c0_10 = arith.constant 0 : index
    %c0_11 = arith.constant 0 : index
    %25 = vector.load %arg5[%c0_10, %c0_11] : memref<128x128xf32, #tpu.memory_space<vmem>>, vector<128x128xf32>
    %cst_12 = arith.constant dense<0.000000e+00> : vector<128x128xf32>
    %26 = tpu.matmul %24, %25, %cst_12 {dimension_numbers = #tpu.dot_dimension_numbers<[1], [0], [0], [1], [0, 0, 1, 1], [], []>} : vector<128x128xf32>, vector<128x128xf32>, vector<128x128xf32> -> vector<128x128xf32>
    %c0_13 = arith.constant 0 : index
    %c0_14 = arith.constant 0 : index
    %27 = vector.load %arg6[%c0_13, %c0_14] : memref<1x128xf32, #tpu.memory_space<vmem>>, vector<1x128xf32>
    %28 = vector.broadcast %27 : vector<1x128xf32> to vector<128x128xf32>
    %29 = arith.addf %26, %28 : vector<128x128xf32>
    %30 = arith.addf %29, %0 : vector<128x128xf32>
    %c0_15 = arith.constant 0 : index
    %c0_16 = arith.constant 0 : index
    %31 = vector.load %arg7[%c0_15, %c0_16] : memref<128x128xf32, #tpu.memory_space<vmem>>, vector<128x128xf32>
    tpu.vector_store %arg7[%c0_15, %c0_16], %30 {strides = array<i32>} : memref<128x128xf32, #tpu.memory_space<vmem>>, vector<128x128xf32>,
    return
  }
  func.func @transform_0(%arg0: i32) -> (i32, i32) {
    %c0_i32 = arith.constant 0 : i32
    %c0_i32_0 = arith.constant 0 : i32
    return %arg0, %c0_i32 : i32, i32
  }
  func.func @transform_1(%arg0: i32) -> (i32, i32) {
    %c0_i32 = arith.constant 0 : i32
    %c0_i32_0 = arith.constant 0 : i32
    return %arg0, %c0_i32 : i32, i32
  }
  func.func @transform_2(%arg0: i32) -> (i32, i32) {
    %c0_i32 = arith.constant 0 : i32
    %c0_i32_0 = arith.constant 0 : i32
    %c0_i32_1 = arith.constant 0 : i32
    return %c0_i32, %c0_i32_0 : i32, i32
  }
  func.func @transform_3(%arg0: i32) -> (i32, i32) {
    %c0_i32 = arith.constant 0 : i32
    %c0_i32_0 = arith.constant 0 : i32
    %c0_i32_1 = arith.constant 0 : i32
    return %c0_i32, %c0_i32_0 : i32, i32
  }
  func.func @transform_4(%arg0: i32) -> (i32, i32) {
    %c0_i32 = arith.constant 0 : i32
    %c0_i32_0 = arith.constant 0 : i32
    %c0_i32_1 = arith.constant 0 : i32
    return %c0_i32, %c0_i32_0 : i32, i32
  }
  func.func @transform_5(%arg0: i32) -> (i32, i32) {
    %c0_i32 = arith.constant 0 : i32
    %c0_i32_0 = arith.constant 0 : i32
    %c0_i32_1 = arith.constant 0 : i32
    return %c0_i32, %c0_i32_0 : i32, i32
  }
  func.func @transform_6(%arg0: i32) -> (i32, i32) {
    %c0_i32 = arith.constant 0 : i32
    %c0_i32_0 = arith.constant 0 : i32
    return %arg0, %c0_i32 : i32, i32
  }
}

</mosaic_0001>

<llo_original>
// kernel: residual5_forward.1
$region0: #{residual5_forward.1}
  #allocation0 [shape = 'u32[]', space=smem, size = 0x4, offset = 0x4, fixed_abs, tag = 'smem constant byte address 0x4 - core index']
  #allocation1 [shape = 'u32[144,128]{1,0:T(1,128)}', space=vmem, size = 0x12000, scoped, tag = 'internal scratch']
  %s0 = inlined_call_operand.vmem [shape: f32[128,128], index: 0, kind: input, shape index: {}]
  %s1 = inlined_call_operand.vmem [shape: f32[128,4], index: 1, kind: input, shape index: {}]
  %s2 = inlined_call_operand.vmem [shape: f32[128,128], index: 2, kind: input, shape index: {}]
  %s3 = inlined_call_operand.vmem [shape: f32[1,128], index: 3, kind: input, shape index: {}]
  %s4 = inlined_call_operand.vmem [shape: f32[128,128], index: 4, kind: input, shape index: {}]
  %s5 = inlined_call_operand.vmem [shape: f32[1,128], index: 5, kind: input, shape index: {}]
  %s6 = inlined_call_operand.vmem [shape: f32[128,128], index: 6, kind: output, shape index: {}]
  %s7 = sld [smem:[#allocation0]]
  $region34: #{residual5_forward.1} parent=0
    _
  %s9 = ssub.s32 1, %s7
  %s10 = scalar_select 0, %s9, %s7
  // Predicated region
  $region2: #{residual5_forward.1} parent=0 // pred_check
    _
  $region3: #{residual5_forward.1} parent=0 // pred_check_branch
    %12 = sbr.rel (0) target = $region5
  $region4: #{residual5_forward.1} parent=0 // pred_region
    _
  $region5: #{residual5_forward.1} parent=0 // pred_fallthru
    _
  // Predicated region
  $region6: #{residual5_forward.1} parent=0 // pred_check
    _
  $region7: #{residual5_forward.1} parent=0 // pred_check_branch
    %14 = sbr.rel (0) target = $region9
  $region8: #{residual5_forward.1} parent=0 // pred_region
    _
  $region9: #{residual5_forward.1} parent=0 // pred_fallthru
    _
  // Predicated region
  $region10: #{residual5_forward.1} parent=0 // pred_check
    _
  $region11: #{residual5_forward.1} parent=0 // pred_check_branch
    %16 = sbr.rel (0) target = $region13
  $region12: #{residual5_forward.1} parent=0 // pred_region
    _
  $region13: #{residual5_forward.1} parent=0 // pred_fallthru
    _
  // Predicated region
  $region14: #{residual5_forward.1} parent=0 // pred_check
    _
  $region15: #{residual5_forward.1} parent=0 // pred_check_branch
    %18 = sbr.rel (0) target = $region17
  $region16: #{residual5_forward.1} parent=0 // pred_region
    _
  $region17: #{residual5_forward.1} parent=0 // pred_fallthru
    _
  // Predicated region
  $region18: #{residual5_forward.1} parent=0 // pred_check
    _
  $region19: #{residual5_forward.1} parent=0 // pred_check_branch
    %20 = sbr.rel (0) target = $region21
  $region20: #{residual5_forward.1} parent=0 // pred_region
    _
  $region21: #{residual5_forward.1} parent=0 // pred_fallthru
    _
  // Predicated region
  $region22: #{residual5_forward.1} parent=0 // pred_check
    _
  $region23: #{residual5_forward.1} parent=0 // pred_check_branch
    %22 = sbr.rel (0) target = $region25
  $region24: #{residual5_forward.1} parent=0 // pred_region
    _
  $region25: #{residual5_forward.1} parent=0 // pred_fallthru
    _
  %v23 = vld [vmem:[%s0] sm:$0xff]
  %v24 = vld [vmem:[%s0 + $0x8] sm:$0xff]
  %v25 = vld [vmem:[%s0 + $0x10] sm:$0xff]
  %v26 = vld [vmem:[%s0 + $0x18] sm:$0xff]
  %v27 = vld [vmem:[%s0 + $0x20] sm:$0xff]
  %v28 = vld [vmem:[%s0 + $0x28] sm:$0xff]
  %v29 = vld [vmem:[%s0 + $0x30] sm:$0xff]
  %v30 = vld [vmem:[%s0 + $0x38] sm:$0xff]
  %v31 = vld [vmem:[%s0 + $0x40] sm:$0xff]
  %v32 = vld [vmem:[%s0 + $0x48] sm:$0xff]
  %v33 = vld [vmem:[%s0 + $0x50] sm:$0xff]
  %v34 = vld [vmem:[%s0 + $0x58] sm:$0xff]
  %v35 = vld [vmem:[%s0 + $0x60] sm:$0xff]
  %v36 = vld [vmem:[%s0 + $0x68] sm:$0xff]
  %v37 = vld [vmem:[%s0 + $0x70] sm:$0xff]
  %v38 = vld [vmem:[%s0 + $0x78] sm:$0xff]
  %v39 = vld [vmem:[%s1] sm:$0xff]
  %v40 = vld [vmem:[%s1 + $0x8] sm:$0xff]
  %v41 = vld [vmem:[%s1 + $0x10] sm:$0xff]
  %v42 = vld [vmem:[%s1 + $0x18] sm:$0xff]
  %v43 = vld [vmem:[%s1 + $0x20] sm:$0xff]
  %v44 = vld [vmem:[%s1 + $0x28] sm:$0xff]
  %v45 = vld [vmem:[%s1 + $0x30] sm:$0xff]
  %v46 = vld [vmem:[%s1 + $0x38] sm:$0xff]
  %v47 = vld [vmem:[%s1 + $0x40] sm:$0xff]
  %v48 = vld [vmem:[%s1 + $0x48] sm:$0xff]
  %v49 = vld [vmem:[%s1 + $0x50] sm:$0xff]
  %v50 = vld [vmem:[%s1 + $0x58] sm:$0xff]
  %v51 = vld [vmem:[%s1 + $0x60] sm:$0xff]
  %v52 = vld [vmem:[%s1 + $0x68] sm:$0xff]
  %v53 = vld [vmem:[%s1 + $0x70] sm:$0xff]
  %v54 = vld [vmem:[%s1 + $0x78] sm:$0xff]
  %56 = vset.pattern.permute.xlu0 0
  %57 = vperm.xlu0 %56, %v39
  %v58 = vpop.permute.xlu0 %57
  %61 = vset.pattern.permute.xlu0 0
  %62 = vperm.xlu0 %61, %v40
  %v63 = vpop.permute.xlu0 %62
  %66 = vset.pattern.permute.xlu0 0
  %67 = vperm.xlu0 %66, %v41
  %v68 = vpop.permute.xlu0 %67
  %71 = vset.pattern.permute.xlu0 0
  %72 = vperm.xlu0 %71, %v42
  %v73 = vpop.permute.xlu0 %72
  %76 = vset.pattern.permute.xlu0 0
  %77 = vperm.xlu0 %76, %v43
  %v78 = vpop.permute.xlu0 %77
  %81 = vset.pattern.permute.xlu0 0
  %82 = vperm.xlu0 %81, %v44
  %v83 = vpop.permute.xlu0 %82
  %86 = vset.pattern.permute.xlu0 0
  %87 = vperm.xlu0 %86, %v45
  %v88 = vpop.permute.xlu0 %87
  %91 = vset.pattern.permute.xlu0 0
  %92 = vperm.xlu0 %91, %v46
  %v93 = vpop.permute.xlu0 %92
  %96 = vset.pattern.permute.xlu0 0
  %97 = vperm.xlu0 %96, %v47
  %v98 = vpop.permute.xlu0 %97
  %101 = vset.pattern.permute.xlu0 0
  %102 = vperm.xlu0 %101, %v48
  %v103 = vpop.permute.xlu0 %102
  %106 = vset.pattern.permute.xlu0 0
  %107 = vperm.xlu0 %106, %v49
  %v108 = vpop.permute.xlu0 %107
  %111 = vset.pattern.permute.xlu0 0
  %112 = vperm.xlu0 %111, %v50
  %v113 = vpop.permute.xlu0 %112
  %116 = vset.pattern.permute.xlu0 0
  %117 = vperm.xlu0 %116, %v51
  %v118 = vpop.permute.xlu0 %117
  %121 = vset.pattern.permute.xlu0 0
  %122 = vperm.xlu0 %121, %v52
  %v123 = vpop.permute.xlu0 %122
  %126 = vset.pattern.permute.xlu0 0
  %127 = vperm.xlu0 %126, %v53
  %v128 = vpop.permute.xlu0 %127
  %131 = vset.pattern.permute.xlu0 0
  %132 = vperm.xlu0 %131, %v54
  %v133 = vpop.permute.xlu0 %132
  %v135 = vmul.f32 %v23, %v58
  %v136 = vmul.f32 %v24, %v63
  %v137 = vmul.f32 %v25, %v68
  %v138 = vmul.f32 %v26, %v73
  %v139 = vmul.f32 %v27, %v78
  %v140 = vmul.f32 %v28, %v83
  %v141 = vmul.f32 %v29, %v88
  %v142 = vmul.f32 %v30, %v93
  %v143 = vmul.f32 %v31, %v98
  %v144 = vmul.f32 %v32, %v103
  %v145 = vmul.f32 %v33, %v108
  %v146 = vmul.f32 %v34, %v113
  %v147 = vmul.f32 %v35, %v118
  %v148 = vmul.f32 %v36, %v123
  %v149 = vmul.f32 %v37, %v128
  %v150 = vmul.f32 %v38, %v133
  %151 = vset.pattern.permute.xlu0 1
  %152 = vperm.xlu0 %151, %v39
  %v153 = vpop.permute.xlu0 %152
  %155 = vset.pattern.permute.xlu0 1
  %156 = vperm.xlu0 %155, %v40
  %v157 = vpop.permute.xlu0 %156
  %159 = vset.pattern.permute.xlu0 1
  %160 = vperm.xlu0 %159, %v41
  %v161 = vpop.permute.xlu0 %160
  %163 = vset.pattern.permute.xlu0 1
  %164 = vperm.xlu0 %163, %v42
  %v165 = vpop.permute.xlu0 %164
  %167 = vset.pattern.permute.xlu0 1
  %168 = vperm.xlu0 %167, %v43
  %v169 = vpop.permute.xlu0 %168
  %171 = vset.pattern.permute.xlu0 1
  %172 = vperm.xlu0 %171, %v44
  %v173 = vpop.permute.xlu0 %172
  %175 = vset.pattern.permute.xlu0 1
  %176 = vperm.xlu0 %175, %v45
  %v177 = vpop.permute.xlu0 %176
  %179 = vset.pattern.permute.xlu0 1
  %180 = vperm.xlu0 %179, %v46
  %v181 = vpop.permute.xlu0 %180
  %183 = vset.pattern.permute.xlu0 1
  %184 = vperm.xlu0 %183, %v47
  %v185 = vpop.permute.xlu0 %184
  %187 = vset.pattern.permute.xlu0 1
  %188 = vperm.xlu0 %187, %v48
  %v189 = vpop.permute.xlu0 %188
  %191 = vset.pattern.permute.xlu0 1
  %192 = vperm.xlu0 %191, %v49
  %v193 = vpop.permute.xlu0 %192
  %195 = vset.pattern.permute.xlu0 1
  %196 = vperm.xlu0 %195, %v50
  %v197 = vpop.permute.xlu0 %196
  %199 = vset.pattern.permute.xlu0 1
  %200 = vperm.xlu0 %199, %v51
  %v201 = vpop.permute.xlu0 %200
  %203 = vset.pattern.permute.xlu0 1
  %204 = vperm.xlu0 %203, %v52
  %v205 = vpop.permute.xlu0 %204
  %207 = vset.pattern.permute.xlu0 1
  %208 = vperm.xlu0 %207, %v53
  %v209 = vpop.permute.xlu0 %208
  %211 = vset.pattern.permute.xlu0 1
  %212 = vperm.xlu0 %211, %v54
  %v213 = vpop.permute.xlu0 %212
  %v215 = vadd.f32 %v135, %v153
  %v216 = vadd.f32 %v136, %v157
  %v217 = vadd.f32 %v137, %v161
  %v218 = vadd.f32 %v138, %v165
  %v219 = vadd.f32 %v139, %v169
  %v220 = vadd.f32 %v140, %v173
  %v221 = vadd.f32 %v141, %v177
  %v222 = vadd.f32 %v142, %v181
  %v223 = vadd.f32 %v143, %v185
  %v224 = vadd.f32 %v144, %v189
  %v225 = vadd.f32 %v145, %v193
  %v226 = vadd.f32 %v146, %v197
  %v227 = vadd.f32 %v147, %v201
  %v228 = vadd.f32 %v148, %v205
  %v229 = vadd.f32 %v149, %v209
  %v230 = vadd.f32 %v150, %v213
  %v231 = vmax.f32 %v215, 0.0
  %v232 = vmax.f32 %v216, 0.0
  %v233 = vmax.f32 %v217, 0.0
  %v234 = vmax.f32 %v218, 0.0
  %v235 = vmax.f32 %v219, 0.0
  %v236 = vmax.f32 %v220, 0.0
  %v237 = vmax.f32 %v221, 0.0
  %v238 = vmax.f32 %v222, 0.0
  %v239 = vmax.f32 %v223, 0.0
  %v240 = vmax.f32 %v224, 0.0
  %v241 = vmax.f32 %v225, 0.0
  %v242 = vmax.f32 %v226, 0.0
  %v243 = vmax.f32 %v227, 0.0
  %v244 = vmax.f32 %v228, 0.0
  %v245 = vmax.f32 %v229, 0.0
  %v246 = vmax.f32 %v230, 0.0
  %v247 = vld [vmem:[%s2] sm:$0xff]
  %v248 = vld [vmem:[%s2 + $0x8] sm:$0xff]
  %v249 = vld [vmem:[%s2 + $0x10] sm:$0xff]
  %v250 = vld [vmem:[%s2 + $0x18] sm:$0xff]
  %v251 = vld [vmem:[%s2 + $0x20] sm:$0xff]
  %v252 = vld [vmem:[%s2 + $0x28] sm:$0xff]
  %v253 = vld [vmem:[%s2 + $0x30] sm:$0xff]
  %v254 = vld [vmem:[%s2 + $0x38] sm:$0xff]
  %v255 = vld [vmem:[%s2 + $0x40] sm:$0xff]
  %v256 = vld [vmem:[%s2 + $0x48] sm:$0xff]
  %v257 = vld [vmem:[%s2 + $0x50] sm:$0xff]
  %v258 = vld [vmem:[%s2 + $0x58] sm:$0xff]
  %v259 = vld [vmem:[%s2 + $0x60] sm:$0xff]
  %v260 = vld [vmem:[%s2 + $0x68] sm:$0xff]
  %v261 = vld [vmem:[%s2 + $0x70] sm:$0xff]
  %v262 = vld [vmem:[%s2 + $0x78] sm:$0xff]
  %v263 = vld [vmem:[%s3] sm:$0x1]
  %v265 = vlaneseq
  %v266 = vshrl.u32 %v265, 7
  %v267 = vsub.s32 0, %v266
  %v268 = vrot.slane %v263, %v267
  %270 = vmatprep.subr.mxu0 0.0
  %271 = vmatpush1.msra.mxu0 %v262
  %272 = vmatprep.subr.mxu0 0.0
  %273 = vmatpush1.msra.mxu0 %v261
  %274 = vmatprep.subr.mxu0 0.0
  %275 = vmatpush1.msra.mxu0 %v260
  %276 = vmatprep.subr.mxu0 0.0
  %277 = vmatpush1.msra.mxu0 %v259
  %278 = vmatprep.subr.mxu0 0.0
  %279 = vmatpush1.msra.mxu0 %v258
  %280 = vmatprep.subr.mxu0 0.0
  %281 = vmatpush1.msra.mxu0 %v257
  %282 = vmatprep.subr.mxu0 0.0
  %283 = vmatpush1.msra.mxu0 %v256
  %284 = vmatprep.subr.mxu0 0.0
  %285 = vmatpush1.msra.mxu0 %v255
  %286 = vmatprep.subr.mxu0 0.0
  %287 = vmatpush1.msra.mxu0 %v254
  %288 = vmatprep.subr.mxu0 0.0
  %289 = vmatpush1.msra.mxu0 %v253
  %290 = vmatprep.subr.mxu0 0.0
  %291 = vmatpush1.msra.mxu0 %v252
  %292 = vmatprep.subr.mxu0 0.0
  %293 = vmatpush1.msra.mxu0 %v251
  %294 = vmatprep.subr.mxu0 0.0
  %295 = vmatpush1.msra.mxu0 %v250
  %296 = vmatprep.subr.mxu0 0.0
  %297 = vmatpush1.msra.mxu0 %v249
  %298 = vmatprep.subr.mxu0 0.0
  %299 = vmatpush1.msra.mxu0 %v248
  %300 = vmatprep.subr.mxu0 0.0
  %301 = vmatpush1.msra.mxu0 %v247
  %302 = vmatprep.subr.mxu0 0.0
  %303 = vmatpush2.msra.mxu0 0.0
  %304 = vmatprep.subr.mxu0 0.0
  %305 = vmatpush2.msra.mxu0 0.0
  %306 = vmatprep.subr.mxu0 0.0
  %307 = vmatpush2.msra.mxu0 0.0
  %308 = vmatprep.subr.mxu0 0.0
  %309 = vmatpush2.msra.mxu0 0.0
  %310 = vmatprep.subr.mxu0 0.0
  %311 = vmatpush2.msra.mxu0 0.0
  %312 = vmatprep.subr.mxu0 0.0
  %313 = vmatpush2.msra.mxu0 0.0
  %314 = vmatprep.subr.mxu0 0.0
  %315 = vmatpush2.msra.mxu0 0.0
  %316 = vmatprep.subr.mxu0 0.0
  %317 = vmatpush2.msra.mxu0 0.0
  %318 = vmatprep.subr.mxu0 0.0
  %319 = vmatpush2.msra.mxu0 0.0
  %320 = vmatprep.subr.mxu0 0.0
  %321 = vmatpush2.msra.mxu0 0.0
  %322 = vmatprep.subr.mxu0 0.0
  %323 = vmatpush2.msra.mxu0 0.0
  %324 = vmatprep.subr.mxu0 0.0
  %325 = vmatpush2.msra.mxu0 0.0
  %326 = vmatprep.subr.mxu0 0.0
  %327 = vmatpush2.msra.mxu0 0.0
  %328 = vmatprep.subr.mxu0 0.0
  %329 = vmatpush2.msra.mxu0 0.0
  %330 = vmatprep.subr.mxu0 0.0
  %331 = vmatpush2.msra.mxu0 0.0
  %332 = vmatprep.subr.mxu0 0.0
  %333 = vmatpush2.msra.mxu0 0.0
  %334 = vmatprep.mubr.f32.mxu0 0.0
  %335 = vmatmul.mubr.f32.gmra.mxu0 %v231
  %v336 = vpop.f32.mrf.mxu0
  %v337 = vadd.f32 %v268, %v336
  %v338 = vpop.f32.mrf.mxu0
  %339 = vmatprep.mubr.f32.mxu0 0.0
  %340 = vmatmul.mubr.f32.gmra.mxu0 %v232
  %v341 = vpop.f32.mrf.mxu0
  %v342 = vadd.f32 %v268, %v341
  %v343 = vpop.f32.mrf.mxu0
  %344 = vmatprep.mubr.f32.mxu0 0.0
  %345 = vmatmul.mubr.f32.gmra.mxu0 %v233
  %v346 = vpop.f32.mrf.mxu0
  %v347 = vadd.f32 %v268, %v346
  %v348 = vpop.f32.mrf.mxu0
  %349 = vmatprep.mubr.f32.mxu0 0.0
  %350 = vmatmul.mubr.f32.gmra.mxu0 %v234
  %v351 = vpop.f32.mrf.mxu0
  %v352 = vadd.f32 %v268, %v351
  %v353 = vpop.f32.mrf.mxu0
  %354 = vmatprep.mubr.f32.mxu0 0.0
  %355 = vmatmul.mubr.f32.gmra.mxu0 %v235
  %v356 = vpop.f32.mrf.mxu0
  %v357 = vadd.f32 %v268, %v356
  %v358 = vpop.f32.mrf.mxu0
  %359 = vmatprep.mubr.f32.mxu0 0.0
  %360 = vmatmul.mubr.f32.gmra.mxu0 %v236
  %v361 = vpop.f32.mrf.mxu0
  %v362 = vadd.f32 %v268, %v361
  %v363 = vpop.f32.mrf.mxu0
  %364 = vmatprep.mubr.f32.mxu0 0.0
  %365 = vmatmul.mubr.f32.gmra.mxu0 %v237
  %v366 = vpop.f32.mrf.mxu0
  %v367 = vadd.f32 %v268, %v366
  %v368 = vpop.f32.mrf.mxu0
  %369 = vmatprep.mubr.f32.mxu0 0.0
  %370 = vmatmul.mubr.f32.gmra.mxu0 %v238
  %v371 = vpop.f32.mrf.mxu0
  %v372 = vadd.f32 %v268, %v371
  %v373 = vpop.f32.mrf.mxu0
  %374 = vmatprep.mubr.f32.mxu0 0.0
  %375 = vmatmul.mubr.f32.gmra.mxu0 %v239
  %v376 = vpop.f32.mrf.mxu0
  %v377 = vadd.f32 %v268, %v376
  %v378 = vpop.f32.mrf.mxu0
  %379 = vmatprep.mubr.f32.mxu0 0.0
  %380 = vmatmul.mubr.f32.gmra.mxu0 %v240
  %v381 = vpop.f32.mrf.mxu0
  %v382 = vadd.f32 %v268, %v381
  %v383 = vpop.f32.mrf.mxu0
  %384 = vmatprep.mubr.f32.mxu0 0.0
  %385 = vmatmul.mubr.f32.gmra.mxu0 %v241
  %v386 = vpop.f32.mrf.mxu0
  %v387 = vadd.f32 %v268, %v386
  %v388 = vpop.f32.mrf.mxu0
  %389 = vmatprep.mubr.f32.mxu0 0.0
  %390 = vmatmul.mubr.f32.gmra.mxu0 %v242
  %v391 = vpop.f32.mrf.mxu0
  %v392 = vadd.f32 %v268, %v391
  %v393 = vpop.f32.mrf.mxu0
  %394 = vmatprep.mubr.f32.mxu0 0.0
  %395 = vmatmul.mubr.f32.gmra.mxu0 %v243
  %v396 = vpop.f32.mrf.mxu0
  %v397 = vadd.f32 %v268, %v396
  %v398 = vpop.f32.mrf.mxu0
  %399 = vmatprep.mubr.f32.mxu0 0.0
  %400 = vmatmul.mubr.f32.gmra.mxu0 %v244
  %v401 = vpop.f32.mrf.mxu0
  %v402 = vadd.f32 %v268, %v401
  %v403 = vpop.f32.mrf.mxu0
  %404 = vmatprep.mubr.f32.mxu0 0.0
  %405 = vmatmul.mubr.f32.gmra.mxu0 %v245
  %v406 = vpop.f32.mrf.mxu0
  %v407 = vadd.f32 %v268, %v406
  %v408 = vpop.f32.mrf.mxu0
  %409 = vmatprep.mubr.f32.mxu0 0.0
  %410 = vmatmul.mubr.f32.gmra.mxu0 %v246
  %v411 = vpop.f32.mrf.mxu0
  %v412 = vadd.f32 %v268, %v411
  %v413 = vpop.f32.mrf.mxu0
  %414 = vdwg.mxu0
  %v415 = vmax.f32 %v337, 0.0
  %v416 = vmax.f32 %v342, 0.0
  %v417 = vmax.f32 %v347, 0.0
  %v418 = vmax.f32 %v352, 0.0
  %v419 = vmax.f32 %v357, 0.0
  %v420 = vmax.f32 %v362, 0.0
  %v421 = vmax.f32 %v367, 0.0
  %v422 = vmax.f32 %v372, 0.0
  %v423 = vmax.f32 %v377, 0.0
  %v424 = vmax.f32 %v382, 0.0
  %v425 = vmax.f32 %v387, 0.0
  %v426 = vmax.f32 %v392, 0.0
  %v427 = vmax.f32 %v397, 0.0
  %v428 = vmax.f32 %v402, 0.0
  %v429 = vmax.f32 %v407, 0.0
  %v430 = vmax.f32 %v412, 0.0
  %431 = vset.pattern.permute.xlu0 2
  %432 = vperm.xlu0 %431, %v39
  %v433 = vpop.permute.xlu0 %432
  %435 = vset.pattern.permute.xlu0 2
  %436 = vperm.xlu0 %435, %v40
  %v437 = vpop.permute.xlu0 %436
  %439 = vset.pattern.permute.xlu0 2
  %440 = vperm.xlu0 %439, %v41
  %v441 = vpop.permute.xlu0 %440
  %443 = vset.pattern.permute.xlu0 2
  %444 = vperm.xlu0 %443, %v42
  %v445 = vpop.permute.xlu0 %444
  %447 = vset.pattern.permute.xlu0 2
  %448 = vperm.xlu0 %447, %v43
  %v449 = vpop.permute.xlu0 %448
  %451 = vset.pattern.permute.xlu0 2
  %452 = vperm.xlu0 %451, %v44
  %v453 = vpop.permute.xlu0 %452
  %455 = vset.pattern.permute.xlu0 2
  %456 = vperm.xlu0 %455, %v45
  %v457 = vpop.permute.xlu0 %456
  %459 = vset.pattern.permute.xlu0 2
  %460 = vperm.xlu0 %459, %v46
  %v461 = vpop.permute.xlu0 %460
  %463 = vset.pattern.permute.xlu0 2
  %464 = vperm.xlu0 %463, %v47
  %v465 = vpop.permute.xlu0 %464
  %467 = vset.pattern.permute.xlu0 2
  %468 = vperm.xlu0 %467, %v48
  %v469 = vpop.permute.xlu0 %468
  %471 = vset.pattern.permute.xlu0 2
  %472 = vperm.xlu0 %471, %v49
  %v473 = vpop.permute.xlu0 %472
  %475 = vset.pattern.permute.xlu0 2
  %476 = vperm.xlu0 %475, %v50
  %v477 = vpop.permute.xlu0 %476
  %479 = vset.pattern.permute.xlu0 2
  %480 = vperm.xlu0 %479, %v51
  %v481 = vpop.permute.xlu0 %480
  %483 = vset.pattern.permute.xlu0 2
  %484 = vperm.xlu0 %483, %v52
  %v485 = vpop.permute.xlu0 %484
  %487 = vset.pattern.permute.xlu0 2
  %488 = vperm.xlu0 %487, %v53
  %v489 = vpop.permute.xlu0 %488
  %491 = vset.pattern.permute.xlu0 2
  %492 = vperm.xlu0 %491, %v54
  %v493 = vpop.permute.xlu0 %492
  %v495 = vmul.f32 %v415, %v433
  %v496 = vmul.f32 %v416, %v437
  %v497 = vmul.f32 %v417, %v441
  %v498 = vmul.f32 %v418, %v445
  %v499 = vmul.f32 %v419, %v449
  %v500 = vmul.f32 %v420, %v453
  %v501 = vmul.f32 %v421, %v457
  %v502 = vmul.f32 %v422, %v461
  %v503 = vmul.f32 %v423, %v465
  %v504 = vmul.f32 %v424, %v469
  %v505 = vmul.f32 %v425, %v473
  %v506 = vmul.f32 %v426, %v477
  %v507 = vmul.f32 %v427, %v481
  %v508 = vmul.f32 %v428, %v485
  %v509 = vmul.f32 %v429, %v489
  %v510 = vmul.f32 %v430, %v493
  %511 = vset.pattern.permute.xlu0 3
  %512 = vperm.xlu0 %511, %v39
  %v513 = vpop.permute.xlu0 %512
  %515 = vset.pattern.permute.xlu0 3
  %516 = vperm.xlu0 %515, %v40
  %v517 = vpop.permute.xlu0 %516
  %519 = vset.pattern.permute.xlu0 3
  %520 = vperm.xlu0 %519, %v41
  %v521 = vpop.permute.xlu0 %520
  %523 = vset.pattern.permute.xlu0 3
  %524 = vperm.xlu0 %523, %v42
  %v525 = vpop.permute.xlu0 %524
  %527 = vset.pattern.permute.xlu0 3
  %528 = vperm.xlu0 %527, %v43
  %v529 = vpop.permute.xlu0 %528
  %531 = vset.pattern.permute.xlu0 3
  %532 = vperm.xlu0 %531, %v44
  %v533 = vpop.permute.xlu0 %532
  %535 = vset.pattern.permute.xlu0 3
  %536 = vperm.xlu0 %535, %v45
  %v537 = vpop.permute.xlu0 %536
  %539 = vset.pattern.permute.xlu0 3
  %540 = vperm.xlu0 %539, %v46
  %v541 = vpop.permute.xlu0 %540
  %543 = vset.pattern.permute.xlu0 3
  %544 = vperm.xlu0 %543, %v47
  %v545 = vpop.permute.xlu0 %544
  %547 = vset.pattern.permute.xlu0 3
  %548 = vperm.xlu0 %547, %v48
  %v549 = vpop.permute.xlu0 %548
  %551 = vset.pattern.permute.xlu0 3
  %552 = vperm.xlu0 %551, %v49
  %v553 = vpop.permute.xlu0 %552
  %555 = vset.pattern.permute.xlu0 3
  %556 = vperm.xlu0 %555, %v50
  %v557 = vpop.permute.xlu0 %556
  %559 = vset.pattern.permute.xlu0 3
  %560 = vperm.xlu0 %559, %v51
  %v561 = vpop.permute.xlu0 %560
  %563 = vset.pattern.permute.xlu0 3
  %564 = vperm.xlu0 %563, %v52
  %v565 = vpop.permute.xlu0 %564
  %567 = vset.pattern.permute.xlu0 3
  %568 = vperm.xlu0 %567, %v53
  %v569 = vpop.permute.xlu0 %568
  %571 = vset.pattern.permute.xlu0 3
  %572 = vperm.xlu0 %571, %v54
  %v573 = vpop.permute.xlu0 %572
  %v575 = vadd.f32 %v495, %v513
  %v576 = vadd.f32 %v496, %v517
  %v577 = vadd.f32 %v497, %v521
  %v578 = vadd.f32 %v498, %v525
  %v579 = vadd.f32 %v499, %v529
  %v580 = vadd.f32 %v500, %v533
  %v581 = vadd.f32 %v501, %v537
  %v582 = vadd.f32 %v502, %v541
  %v583 = vadd.f32 %v503, %v545
  %v584 = vadd.f32 %v504, %v549
  %v585 = vadd.f32 %v505, %v553
  %v586 = vadd.f32 %v506, %v557
  %v587 = vadd.f32 %v507, %v561
  %v588 = vadd.f32 %v508, %v565
  %v589 = vadd.f32 %v509, %v569
  %v590 = vadd.f32 %v510, %v573
  %v591 = vmax.f32 %v575, 0.0
  %v592 = vmax.f32 %v576, 0.0
  %v593 = vmax.f32 %v577, 0.0
  %v594 = vmax.f32 %v578, 0.0
  %v595 = vmax.f32 %v579, 0.0
  %v596 = vmax.f32 %v580, 0.0
  %v597 = vmax.f32 %v581, 0.0
  %v598 = vmax.f32 %v582, 0.0
  %v599 = vmax.f32 %v583, 0.0
  %v600 = vmax.f32 %v584, 0.0
  %v601 = vmax.f32 %v585, 0.0
  %v602 = vmax.f32 %v586, 0.0
  %v603 = vmax.f32 %v587, 0.0
  %v604 = vmax.f32 %v588, 0.0
  %v605 = vmax.f32 %v589, 0.0
  %v606 = vmax.f32 %v590, 0.0
  %v607 = vld [vmem:[%s4] sm:$0xff]
  %v608 = vld [vmem:[%s4 + $0x8] sm:$0xff]
  %v609 = vld [vmem:[%s4 + $0x10] sm:$0xff]
  %v610 = vld [vmem:[%s4 + $0x18] sm:$0xff]
  %v611 = vld [vmem:[%s4 + $0x20] sm:$0xff]
  %v612 = vld [vmem:[%s4 + $0x28] sm:$0xff]
  %v613 = vld [vmem:[%s4 + $0x30] sm:$0xff]
  %v614 = vld [vmem:[%s4 + $0x38] sm:$0xff]
  %v615 = vld [vmem:[%s4 + $0x40] sm:$0xff]
  %v616 = vld [vmem:[%s4 + $0x48] sm:$0xff]
  %v617 = vld [vmem:[%s4 + $0x50] sm:$0xff]
  %v618 = vld [vmem:[%s4 + $0x58] sm:$0xff]
  %v619 = vld [vmem:[%s4 + $0x60] sm:$0xff]
  %v620 = vld [vmem:[%s4 + $0x68] sm:$0xff]
  %v621 = vld [vmem:[%s4 + $0x70] sm:$0xff]
  %v622 = vld [vmem:[%s4 + $0x78] sm:$0xff]
  %v623 = vld [vmem:[%s5] sm:$0x1]
  %v625 = vlaneseq
  %v626 = vshrl.u32 %v625, 7
  %v627 = vsub.s32 0, %v626
  %v628 = vrot.slane %v623, %v627
  %630 = vmatprep.subr.mxu0 0.0
  %631 = vmatpush1.msra.mxu0 %v622
  %632 = vmatprep.subr.mxu0 0.0
  %633 = vmatpush1.msra.mxu0 %v621
  %634 = vmatprep.subr.mxu0 0.0
  %635 = vmatpush1.msra.mxu0 %v620
  %636 = vmatprep.subr.mxu0 0.0
  %637 = vmatpush1.msra.mxu0 %v619
  %638 = vmatprep.subr.mxu0 0.0
  %639 = vmatpush1.msra.mxu0 %v618
  %640 = vmatprep.subr.mxu0 0.0
  %641 = vmatpush1.msra.mxu0 %v617
  %642 = vmatprep.subr.mxu0 0.0
  %643 = vmatpush1.msra.mxu0 %v616
  %644 = vmatprep.subr.mxu0 0.0
  %645 = vmatpush1.msra.mxu0 %v615
  %646 = vmatprep.subr.mxu0 0.0
  %647 = vmatpush1.msra.mxu0 %v614
  %648 = vmatprep.subr.mxu0 0.0
  %649 = vmatpush1.msra.mxu0 %v613
  %650 = vmatprep.subr.mxu0 0.0
  %651 = vmatpush1.msra.mxu0 %v612
  %652 = vmatprep.subr.mxu0 0.0
  %653 = vmatpush1.msra.mxu0 %v611
  %654 = vmatprep.subr.mxu0 0.0
  %655 = vmatpush1.msra.mxu0 %v610
  %656 = vmatprep.subr.mxu0 0.0
  %657 = vmatpush1.msra.mxu0 %v609
  %658 = vmatprep.subr.mxu0 0.0
  %659 = vmatpush1.msra.mxu0 %v608
  %660 = vmatprep.subr.mxu0 0.0
  %661 = vmatpush1.msra.mxu0 %v607
  %662 = vmatprep.subr.mxu0 0.0
  %663 = vmatpush2.msra.mxu0 0.0
  %664 = vmatprep.subr.mxu0 0.0
  %665 = vmatpush2.msra.mxu0 0.0
  %666 = vmatprep.subr.mxu0 0.0
  %667 = vmatpush2.msra.mxu0 0.0
  %668 = vmatprep.subr.mxu0 0.0
  %669 = vmatpush2.msra.mxu0 0.0
  %670 = vmatprep.subr.mxu0 0.0
  %671 = vmatpush2.msra.mxu0 0.0
  %672 = vmatprep.subr.mxu0 0.0
  %673 = vmatpush2.msra.mxu0 0.0
  %674 = vmatprep.subr.mxu0 0.0
  %675 = vmatpush2.msra.mxu0 0.0
  %676 = vmatprep.subr.mxu0 0.0
  %677 = vmatpush2.msra.mxu0 0.0
  %678 = vmatprep.subr.mxu0 0.0
  %679 = vmatpush2.msra.mxu0 0.0
  %680 = vmatprep.subr.mxu0 0.0
  %681 = vmatpush2.msra.mxu0 0.0
  %682 = vmatprep.subr.mxu0 0.0
  %683 = vmatpush2.msra.mxu0 0.0
  %684 = vmatprep.subr.mxu0 0.0
  %685 = vmatpush2.msra.mxu0 0.0
  %686 = vmatprep.subr.mxu0 0.0
  %687 = vmatpush2.msra.mxu0 0.0
  %688 = vmatprep.subr.mxu0 0.0
  %689 = vmatpush2.msra.mxu0 0.0
  %690 = vmatprep.subr.mxu0 0.0
  %691 = vmatpush2.msra.mxu0 0.0
  %692 = vmatprep.subr.mxu0 0.0
  %693 = vmatpush2.msra.mxu0 0.0
  %694 = vmatprep.mubr.f32.mxu0 0.0
  %695 = vmatmul.mubr.f32.gmra.mxu0 %v591
  %v696 = vpop.f32.mrf.mxu0
  %v697 = vadd.f32 %v628, %v696
  %v698 = vpop.f32.mrf.mxu0
  %699 = vmatprep.mubr.f32.mxu0 0.0
  %700 = vmatmul.mubr.f32.gmra.mxu0 %v592
  %v701 = vpop.f32.mrf.mxu0
  %v702 = vadd.f32 %v628, %v701
  %v703 = vpop.f32.mrf.mxu0
  %704 = vmatprep.mubr.f32.mxu0 0.0
  %705 = vmatmul.mubr.f32.gmra.mxu0 %v593
  %v706 = vpop.f32.mrf.mxu0
  %v707 = vadd.f32 %v628, %v706
  %v708 = vpop.f32.mrf.mxu0
  %709 = vmatprep.mubr.f32.mxu0 0.0
  %710 = vmatmul.mubr.f32.gmra.mxu0 %v594
  %v711 = vpop.f32.mrf.mxu0
  %v712 = vadd.f32 %v628, %v711
  %v713 = vpop.f32.mrf.mxu0
  %714 = vmatprep.mubr.f32.mxu0 0.0
  %715 = vmatmul.mubr.f32.gmra.mxu0 %v595
  %v716 = vpop.f32.mrf.mxu0
  %v717 = vadd.f32 %v628, %v716
  %v718 = vpop.f32.mrf.mxu0
  %719 = vmatprep.mubr.f32.mxu0 0.0
  %720 = vmatmul.mubr.f32.gmra.mxu0 %v596
  %v721 = vpop.f32.mrf.mxu0
  %v722 = vadd.f32 %v628, %v721
  %v723 = vpop.f32.mrf.mxu0
  %724 = vmatprep.mubr.f32.mxu0 0.0
  %725 = vmatmul.mubr.f32.gmra.mxu0 %v597
  %v726 = vpop.f32.mrf.mxu0
  %v727 = vadd.f32 %v628, %v726
  %v728 = vpop.f32.mrf.mxu0
  %729 = vmatprep.mubr.f32.mxu0 0.0
  %730 = vmatmul.mubr.f32.gmra.mxu0 %v598
  %v731 = vpop.f32.mrf.mxu0
  %v732 = vadd.f32 %v628, %v731
  %v733 = vpop.f32.mrf.mxu0
  %734 = vmatprep.mubr.f32.mxu0 0.0
  %735 = vmatmul.mubr.f32.gmra.mxu0 %v599
  %v736 = vpop.f32.mrf.mxu0
  %v737 = vadd.f32 %v628, %v736
  %v738 = vpop.f32.mrf.mxu0
  %739 = vmatprep.mubr.f32.mxu0 0.0
  %740 = vmatmul.mubr.f32.gmra.mxu0 %v600
  %v741 = vpop.f32.mrf.mxu0
  %v742 = vadd.f32 %v628, %v741
  %v743 = vpop.f32.mrf.mxu0
  %744 = vmatprep.mubr.f32.mxu0 0.0
  %745 = vmatmul.mubr.f32.gmra.mxu0 %v601
  %v746 = vpop.f32.mrf.mxu0
  %v747 = vadd.f32 %v628, %v746
  %v748 = vpop.f32.mrf.mxu0
  %749 = vmatprep.mubr.f32.mxu0 0.0
  %750 = vmatmul.mubr.f32.gmra.mxu0 %v602
  %v751 = vpop.f32.mrf.mxu0
  %v752 = vadd.f32 %v628, %v751
  %v753 = vpop.f32.mrf.mxu0
  %754 = vmatprep.mubr.f32.mxu0 0.0
  %755 = vmatmul.mubr.f32.gmra.mxu0 %v603
  %v756 = vpop.f32.mrf.mxu0
  %v757 = vadd.f32 %v628, %v756
  %v758 = vpop.f32.mrf.mxu0
  %759 = vmatprep.mubr.f32.mxu0 0.0
  %760 = vmatmul.mubr.f32.gmra.mxu0 %v604
  %v761 = vpop.f32.mrf.mxu0
  %v762 = vadd.f32 %v628, %v761
  %v763 = vpop.f32.mrf.mxu0
  %764 = vmatprep.mubr.f32.mxu0 0.0
  %765 = vmatmul.mubr.f32.gmra.mxu0 %v605
  %v766 = vpop.f32.mrf.mxu0
  %v767 = vadd.f32 %v628, %v766
  %v768 = vpop.f32.mrf.mxu0
  %769 = vmatprep.mubr.f32.mxu0 0.0
  %770 = vmatmul.mubr.f32.gmra.mxu0 %v606
  %v771 = vpop.f32.mrf.mxu0
  %v772 = vadd.f32 %v628, %v771
  %v773 = vpop.f32.mrf.mxu0
  %774 = vdwg.mxu0
  %v775 = vadd.f32 %v697, %v23
  %v776 = vadd.f32 %v702, %v24
  %v777 = vadd.f32 %v707, %v25
  %v778 = vadd.f32 %v712, %v26
  %v779 = vadd.f32 %v717, %v27
  %v780 = vadd.f32 %v722, %v28
  %v781 = vadd.f32 %v727, %v29
  %v782 = vadd.f32 %v732, %v30
  %v783 = vadd.f32 %v737, %v31
  %v784 = vadd.f32 %v742, %v32
  %v785 = vadd.f32 %v747, %v33
  %v786 = vadd.f32 %v752, %v34
  %v787 = vadd.f32 %v757, %v35
  %v788 = vadd.f32 %v762, %v36
  %v789 = vadd.f32 %v767, %v37
  %v790 = vadd.f32 %v772, %v38
  %791 = vst [vmem:[%s6] sm:$0xff] %v775
  %792 = vst [vmem:[%s6 + $0x8] sm:$0xff] %v776
  %793 = vst [vmem:[%s6 + $0x10] sm:$0xff] %v777
  %794 = vst [vmem:[%s6 + $0x18] sm:$0xff] %v778
  %795 = vst [vmem:[%s6 + $0x20] sm:$0xff] %v779
  %796 = vst [vmem:[%s6 + $0x28] sm:$0xff] %v780
  %797 = vst [vmem:[%s6 + $0x30] sm:$0xff] %v781
  %798 = vst [vmem:[%s6 + $0x38] sm:$0xff] %v782
  %799 = vst [vmem:[%s6 + $0x40] sm:$0xff] %v783
  %800 = vst [vmem:[%s6 + $0x48] sm:$0xff] %v784
  %801 = vst [vmem:[%s6 + $0x50] sm:$0xff] %v785
  %802 = vst [vmem:[%s6 + $0x58] sm:$0xff] %v786
  %803 = vst [vmem:[%s6 + $0x60] sm:$0xff] %v787
  %804 = vst [vmem:[%s6 + $0x68] sm:$0xff] %v788
  %805 = vst [vmem:[%s6 + $0x70] sm:$0xff] %v789
  %806 = vst [vmem:[%s6 + $0x78] sm:$0xff] %v790
  // Predicated region
  $region26: #{residual5_forward.1} parent=0 // pred_check
    _
  $region27: #{residual5_forward.1} parent=0 // pred_check_branch
    %808 = sbr.rel (0) target = $region29
  $region28: #{residual5_forward.1} parent=0 // pred_region
    _
  $region29: #{residual5_forward.1} parent=0 // pred_fallthru
    _
  // Predicated region
  $region30: #{residual5_forward.1} parent=0 // pred_check
    _
  $region31: #{residual5_forward.1} parent=0 // pred_check_branch
    %810 = sbr.rel (0) target = $region33
  $region32: #{residual5_forward.1} parent=0 // pred_region
    _
  $region33: #{residual5_forward.1} parent=0 // pred_fallthru
    _

</llo_original>
